<compile_context>
chip_gen: v7x
topology: tpu7x:2x2x1
jax: 0.10.0
libtpu: 0.0.40
codegen_flags: <defaults>
</compile_context>

<pallas_src>
import jax
import jax.numpy as jnp
from jax.experimental import pallas as pl
from jax.experimental.pallas import tpu as pltpu


def _round_up(x, m):
    return (x + m - 1) // m * m


def gate_kernel(text_ref, vis_ref, thr_ref,
                w1t_ref, w1v_ref, b1_ref, w2_ref, b2_ref, out_ref):
    text = text_ref[...]          # (TM, D)
    vis = vis_ref[...]            # (TM, D)

    # gate = Sigmoid(W2 @ Tanh(W1 @ cat([text, vis])))  -- concat folded into
    # two MXU matmuls on the row tile.
    h = jnp.tanh(
        jnp.dot(text, w1t_ref[...], preferred_element_type=jnp.float32)
        + jnp.dot(vis, w1v_ref[...], preferred_element_type=jnp.float32)
        + b1_ref[...]
    )
    g = jax.nn.sigmoid(
        jnp.dot(h, w2_ref[...], preferred_element_type=jnp.float32) + b2_ref[...]
    )                              # (TM, D)

    # updated = vis*(1-mask) + vis*g*mask  ==  vis * where(g > thr, g, 1)
    thr = thr_ref[...]             # (TM, 1), per-row (== per-batch) threshold
    out_ref[...] = vis * jnp.where(g > thr, g, 1.0)


def context_aware_gate(text, visual, params):
    """text, visual: (B, S, D) float32.  Returns (B, S, D) float32."""
    B, S, D = text.shape
    assert visual.shape == (B, S, D), "kernel assumes text_dim == visual_dim"
    w1, b1, w2, b2, wt, bt = params

    # --- hoisted threshold head (plain JAX, O(B*D)) -------------------------
    text_mean = jnp.mean(text, axis=1)                    # (B, D)
    thr = jax.nn.sigmoid(text_mean @ wt + bt)             # (B, 1)
    thr_rows = jnp.broadcast_to(thr[:, None, :], (B, S, 1)).reshape(B * S, 1)

    # --- flatten batch*seq into a single row dimension ----------------------
    rows = B * S
    text_f = text.reshape(rows, D)
    vis_f = visual.reshape(rows, D)

    # Row-tile size: as large as useful, but keep >= 2 grid steps when the
    # problem allows so the "parallel" axis can be megacore-sharded on v7x.
    if rows > 8:
        tm = min(512, _round_up(max(rows // 2, 8), 8))
    else:
        tm = _round_up(rows, 8)
    rows_p = _round_up(rows, tm)
    if rows_p != rows:
        pad = rows_p - rows
        text_f = jnp.pad(text_f, ((0, pad), (0, 0)))
        vis_f = jnp.pad(vis_f, ((0, pad), (0, 0)))
        thr_rows = jnp.pad(thr_rows, ((0, pad), (0, 0)))

    # Split the concat-weight into its text / visual halves.
    w1t, w1v = w1[:D, :], w1[D:, :]                        # each (D, D)
    b1_ = b1.reshape(1, D)
    b2_ = b2.reshape(1, D)

    grid = (rows_p // tm,)
    row_spec = pl.BlockSpec((tm, D), lambda i: (i, 0))
    full = lambda shape: pl.BlockSpec(shape, lambda i: tuple(0 for _ in shape))

    out_f = pl.pallas_call(
        gate_kernel,
        out_shape=jax.ShapeDtypeStruct((rows_p, D), jnp.float32),
        grid=grid,
        in_specs=[
            row_spec,                                    # text rows
            row_spec,                                    # visual rows
            pl.BlockSpec((tm, 1), lambda i: (i, 0)),     # per-row threshold
            full((D, D)),                                # W1 (text half)
            full((D, D)),                                # W1 (visual half)
            full((1, D)),                                # b1
            full((D, D)),                                # W2
            full((1, D)),                                # b2
        ],
        out_specs=row_spec,
        compiler_params=pltpu.CompilerParams(
            dimension_semantics=("parallel",),
            vmem_limit_bytes=32 * 1024 * 1024,
        ),
    )(text_f, vis_f, thr_rows, w1t, w1v, b1_, w2, b2_)

    return out_f[:rows].reshape(B, S, D)


def reference(text, visual, params):
    w1, b1, w2, b2, wt, bt = params
    combined = jnp.concatenate([text, visual], axis=-1)
    h = jnp.tanh(combined @ w1 + b1)
    g = jax.nn.sigmoid(h @ w2 + b2)
    text_mean = jnp.mean(text, axis=1)
    thr = jax.nn.sigmoid(text_mean @ wt + bt)              # (B, 1)
    thr = thr[:, :, None]                                  # (B, 1, 1)
    mask = (g > thr).astype(jnp.float32)
    return visual * (1.0 - mask) + visual * g * mask


if __name__ == "__main__":
    B, S, D = 2, 8, 32            # text_dim == visual_dim == 32
    key = jax.random.PRNGKey(0)
    k = jax.random.split(key, 8)

    text = jax.random.normal(k[0], (B, S, D), dtype=jnp.float32)
    visual = jax.random.normal(k[1], (B, S, D), dtype=jnp.float32)

    # Deterministic parameter init (shapes follow the nn.Module; stored as (in, out)).
    scale = 0.1
    w1 = scale * jax.random.normal(k[2], (2 * D, D), dtype=jnp.float32)  # Linear(2D -> D)
    b1 = scale * jax.random.normal(k[3], (D,), dtype=jnp.float32)
    w2 = scale * jax.random.normal(k[4], (D, D), dtype=jnp.float32)      # Linear(D -> D)
    b2 = scale * jax.random.normal(k[5], (D,), dtype=jnp.float32)
    wt = scale * jax.random.normal(k[6], (D, 1), dtype=jnp.float32)      # Linear(D -> 1)
    bt = scale * jax.random.normal(k[7], (1,), dtype=jnp.float32)
    params = (w1, b1, w2, b2, wt, bt)

    out = context_aware_gate(text, visual, params)
    out = jax.block_until_ready(out)

    ref = reference(text, visual, params)
    assert out.shape == (B, S, D)
    assert jnp.allclose(out, ref, atol=1e-5, rtol=1e-5), \
        f"max err {jnp.max(jnp.abs(out - ref))}"
    print("KERNEL_OK")
</pallas_src>

<mosaic_0001>
module attributes {stable_mosaic.version = 11 : i64} {
  func.func @gate_kernel(%arg0: i32, %arg1: memref<8x32xf32, #tpu.memory_space<vmem>>, %arg2: memref<8x32xf32, #tpu.memory_space<vmem>>, %arg3: memref<8x1xf32, #tpu.memory_space<vmem>>, %arg4: memref<32x32xf32, #tpu.memory_space<vmem>>, %arg5: memref<32x32xf32, #tpu.memory_space<vmem>>, %arg6: memref<1x32xf32, #tpu.memory_space<vmem>>, %arg7: memref<32x32xf32, #tpu.memory_space<vmem>>, %arg8: memref<1x32xf32, #tpu.memory_space<vmem>>, %arg9: memref<8x32xf32, #tpu.memory_space<vmem>>) attributes {dimension_semantics = [#tpu.dimension_semantics<parallel>], iteration_bounds = array<i64: 2>, scalar_prefetch = 0 : i64, scratch_operands = 0 : i64, tpu.core_type = #tpu.core_type<tc>, window_params = [{transform_indices = @transform_0, window_bounds = array<i64: 8, 32>}, {transform_indices = @transform_1, window_bounds = array<i64: 8, 32>}, {transform_indices = @transform_2, window_bounds = array<i64: 8, 1>}, {pipeline_mode = #tpu.pipeline_mode<synchronous>, transform_indices = @transform_3, window_bounds = array<i64: 32, 32>}, {pipeline_mode = #tpu.pipeline_mode<synchronous>, transform_indices = @transform_4, window_bounds = array<i64: 32, 32>}, {pipeline_mode = #tpu.pipeline_mode<synchronous>, transform_indices = @transform_5, window_bounds = array<i64: 1, 32>}, {pipeline_mode = #tpu.pipeline_mode<synchronous>, transform_indices = @transform_6, window_bounds = array<i64: 32, 32>}, {pipeline_mode = #tpu.pipeline_mode<synchronous>, transform_indices = @transform_7, window_bounds = array<i64: 1, 32>}, {transform_indices = @transform_8, window_bounds = array<i64: 8, 32>}]} {
    %c0 = arith.constant 0 : index
    %c0_0 = arith.constant 0 : index
    %0 = vector.load %arg1[%c0, %c0_0] : memref<8x32xf32, #tpu.memory_space<vmem>>, vector<8x32xf32>
    %c0_1 = arith.constant 0 : index
    %c0_2 = arith.constant 0 : index
    %1 = vector.load %arg2[%c0_1, %c0_2] : memref<8x32xf32, #tpu.memory_space<vmem>>, vector<8x32xf32>
    %c0_3 = arith.constant 0 : index
    %c0_4 = arith.constant 0 : index
    %2 = vector.load %arg4[%c0_3, %c0_4] : memref<32x32xf32, #tpu.memory_space<vmem>>, vector<32x32xf32>
    %cst = arith.constant dense<0.000000e+00> : vector<8x32xf32>
    %3 = tpu.matmul %0, %2, %cst {dimension_numbers = #tpu.dot_dimension_numbers<[1], [0], [0], [1], [0, 0, 1, 1], [], []>} : vector<8x32xf32>, vector<32x32xf32>, vector<8x32xf32> -> vector<8x32xf32>
    %c0_5 = arith.constant 0 : index
    %c0_6 = arith.constant 0 : index
    %4 = vector.load %arg5[%c0_5, %c0_6] : memref<32x32xf32, #tpu.memory_space<vmem>>, vector<32x32xf32>
    %cst_7 = arith.constant dense<0.000000e+00> : vector<8x32xf32>
    %5 = tpu.matmul %1, %4, %cst_7 {dimension_numbers = #tpu.dot_dimension_numbers<[1], [0], [0], [1], [0, 0, 1, 1], [], []>} : vector<8x32xf32>, vector<32x32xf32>, vector<8x32xf32> -> vector<8x32xf32>
    %6 = arith.addf %3, %5 : vector<8x32xf32>
    %c0_8 = arith.constant 0 : index
    %c0_9 = arith.constant 0 : index
    %7 = vector.load %arg6[%c0_8, %c0_9] : memref<1x32xf32, #tpu.memory_space<vmem>>, vector<1x32xf32>
    %8 = vector.broadcast %7 : vector<1x32xf32> to vector<8x32xf32>
    %9 = arith.addf %6, %8 : vector<8x32xf32>
    %10 = math.tanh %9 : vector<8x32xf32>
    %c0_10 = arith.constant 0 : index
    %c0_11 = arith.constant 0 : index
    %11 = vector.load %arg7[%c0_10, %c0_11] : memref<32x32xf32, #tpu.memory_space<vmem>>, vector<32x32xf32>
    %cst_12 = arith.constant dense<0.000000e+00> : vector<8x32xf32>
    %12 = tpu.matmul %10, %11, %cst_12 {dimension_numbers = #tpu.dot_dimension_numbers<[1], [0], [0], [1], [0, 0, 1, 1], [], []>} : vector<8x32xf32>, vector<32x32xf32>, vector<8x32xf32> -> vector<8x32xf32>
    %c0_13 = arith.constant 0 : index
    %c0_14 = arith.constant 0 : index
    %13 = vector.load %arg8[%c0_13, %c0_14] : memref<1x32xf32, #tpu.memory_space<vmem>>, vector<1x32xf32>
    %14 = vector.broadcast %13 : vector<1x32xf32> to vector<8x32xf32>
    %15 = arith.addf %12, %14 : vector<8x32xf32>
    %16 = arith.negf %15 : vector<8x32xf32>
    %17 = math.exp %16 : vector<8x32xf32>
    %cst_15 = arith.constant 1.000000e+00 : f32
    %18 = vector.broadcast %cst_15 : f32 to vector<8x32xf32>
    %19 = arith.addf %18, %17 : vector<8x32xf32>
    %20 = arith.divf %18, %19 : vector<8x32xf32>
    %c0_16 = arith.constant 0 : index
    %c0_17 = arith.constant 0 : index
    %21 = vector.load %arg3[%c0_16, %c0_17] : memref<8x1xf32, #tpu.memory_space<vmem>>, vector<8x1xf32>
    %22 = vector.broadcast %21 : vector<8x1xf32> to vector<8x32xf32>
    %23 = arith.cmpf ogt, %20, %22 : vector<8x32xf32>
    %cst_18 = arith.constant 1.000000e+00 : f32
    %24 = vector.broadcast %cst_18 : f32 to vector<8x32xf32>
    %25 = arith.select %23, %20, %24 : vector<8x32xi1>, vector<8x32xf32>
    %26 = arith.mulf %1, %25 : vector<8x32xf32>
    %c0_19 = arith.constant 0 : index
    %c0_20 = arith.constant 0 : index
    %27 = vector.load %arg9[%c0_19, %c0_20] : memref<8x32xf32, #tpu.memory_space<vmem>>, vector<8x32xf32>
    tpu.vector_store %arg9[%c0_19, %c0_20], %26 {strides = array<i32>} : memref<8x32xf32, #tpu.memory_space<vmem>>, vector<8x32xf32>,
    return
  }
  func.func @transform_0(%arg0: i32) -> (i32, i32) {
    %c0_i32 = arith.constant 0 : i32
    %c0_i32_0 = arith.constant 0 : i32
    return %arg0, %c0_i32 : i32, i32
  }
  func.func @transform_1(%arg0: i32) -> (i32, i32) {
    %c0_i32 = arith.constant 0 : i32
    %c0_i32_0 = arith.constant 0 : i32
    return %arg0, %c0_i32 : i32, i32
  }
  func.func @transform_2(%arg0: i32) -> (i32, i32) {
    %c0_i32 = arith.constant 0 : i32
    %c0_i32_0 = arith.constant 0 : i32
    return %arg0, %c0_i32 : i32, i32
  }
  func.func @transform_3(%arg0: i32) -> (i32, i32) {
    %c0_i32 = arith.constant 0 : i32
    %c0_i32_0 = arith.constant 0 : i32
    %c0_i32_1 = arith.constant 0 : i32
    return %c0_i32, %c0_i32_0 : i32, i32
  }
  func.func @transform_4(%arg0: i32) -> (i32, i32) {
    %c0_i32 = arith.constant 0 : i32
    %c0_i32_0 = arith.constant 0 : i32
    %c0_i32_1 = arith.constant 0 : i32
    return %c0_i32, %c0_i32_0 : i32, i32
  }
  func.func @transform_5(%arg0: i32) -> (i32, i32) {
    %c0_i32 = arith.constant 0 : i32
    %c0_i32_0 = arith.constant 0 : i32
    %c0_i32_1 = arith.constant 0 : i32
    return %c0_i32, %c0_i32_0 : i32, i32
  }
  func.func @transform_6(%arg0: i32) -> (i32, i32) {
    %c0_i32 = arith.constant 0 : i32
    %c0_i32_0 = arith.constant 0 : i32
    %c0_i32_1 = arith.constant 0 : i32
    return %c0_i32, %c0_i32_0 : i32, i32
  }
  func.func @transform_7(%arg0: i32) -> (i32, i32) {
    %c0_i32 = arith.constant 0 : i32
    %c0_i32_0 = arith.constant 0 : i32
    %c0_i32_1 = arith.constant 0 : i32
    return %c0_i32, %c0_i32_0 : i32, i32
  }
  func.func @transform_8(%arg0: i32) -> (i32, i32) {
    %c0_i32 = arith.constant 0 : i32
    %c0_i32_0 = arith.constant 0 : i32
    return %arg0, %c0_i32 : i32, i32
  }
}

</mosaic_0001>

<llo_original>
// kernel: tpu_custom_call.1
$region0: #{tpu_custom_call.1}
  #allocation0 [shape = 'u32[]', space=smem, size = 0x4, offset = 0x4, fixed_abs, tag = 'smem constant byte address 0x4 - core index']
  #allocation1 [shape = 'u32[144,128]{1,0:T(1,128)}', space=vmem, size = 0x12000, scoped, tag = 'internal scratch']
  %s0 = inlined_call_operand.hbm [shape: f32[16,32], index: 0, kind: input, shape index: {}]
  %s1 = inlined_call_operand.hbm [shape: f32[16,32], index: 1, kind: input, shape index: {}]
  %s2 = inlined_call_operand.vmem [shape: f32[16,1], index: 2, kind: input, shape index: {}]
  %s3 = inlined_call_operand.hbm [shape: f32[32,32], index: 3, kind: input, shape index: {}]
  %s4 = inlined_call_operand.vmem [shape: f32[32,32], index: 4, kind: input, shape index: {}]
  %s5 = inlined_call_operand.vmem [shape: f32[1,32], index: 5, kind: input, shape index: {}]
  %s6 = inlined_call_operand.hbm [shape: f32[32,32], index: 6, kind: input, shape index: {}]
  %s7 = inlined_call_operand.vmem [shape: f32[1,32], index: 7, kind: input, shape index: {}]
  %s8 = inlined_call_operand.hbm [shape: f32[16,32], index: 8, kind: output, shape index: {}]
  %s9 = sld [smem:[#allocation0]]
  $region81: #{tpu_custom_call.1} parent=0
    _
  %s11 = ssub.s32 1, %s9
  %s12 = scalar_select 0, %s11, %s9
  $region1: #{tpu_custom_call.1} parent=0
    #allocation2 [shape = 'u8[8192]{0}', space=vmem, size = 0x2000, scoped, tag = 'input window, operand 0']
    #allocation3 [shape = 's32[2]{0}', space=sflag, size = 0x8, scoped, tag = 'scoped memory for tpu_custom_call.1']
    #allocation4 [shape = 's32[2]{0}', space=sflag, size = 0x8, scoped, tag = 'scoped memory for tpu_custom_call.1']
    #allocation5 [shape = 'u8[8192]{0}', space=vmem, size = 0x2000, scoped, tag = 'input window, operand 1']
    #allocation6 [shape = 's32[2]{0}', space=sflag, size = 0x8, scoped, tag = 'scoped memory for tpu_custom_call.1']
    #allocation7 [shape = 'u8[16384]{0}', space=vmem, size = 0x4000, scoped, tag = 'input window, operand 3, single buffered']
    #allocation8 [shape = 'u8[16384]{0}', space=vmem, size = 0x4000, scoped, tag = 'input window, operand 6, single buffered']
    #allocation9 [shape = 's32[1]{0}', space=sflag, size = 0x4, scoped, tag = 'scoped memory for tpu_custom_call.1']
    #allocation10 [shape = 'u8[8192]{0}', space=vmem, size = 0x2000, scoped, tag = 'output window, operand 0']
    %13 = vsyncpa [#allocation3], 0
    %s14 = scalar_lea.sflag [#allocation3], 1
    %15 = vsyncpa %s14, 0
    %16 = vsyncpa [#allocation6], 0
    %s17 = scalar_lea.sflag [#allocation6], 1
    %18 = vsyncpa %s17, 0
    %19 = vsyncpa [#allocation9], 0
    %20 = vsyncpa [#allocation4], 0
    %s21 = scalar_lea.sflag [#allocation4], 1
    %22 = vsyncpa %s21, 0
    loop: start=0, step=1, limit=4
    $region2: #{tpu_custom_call.1} parent=1 // loop_pre_header
      _
    $region3: #{tpu_custom_call.1} parent=1 // loop_header
      %s24 = sphi 0, %s28
      %p25 = scmp.ge.s32.totalorder %s24, 4
      %s34 = sphi 0, %s36
      %s37 = sphi 0, %s34
      %s38 = sphi 0, %s37
      %s54 = sphi 0, %s38
      %s60 = sphi 0, %s62
      %s63 = sphi 0, %s60
      %s64 = sphi 0, %s63
      %s80 = sphi 0, %s64
      %s86 = sphi 0, %s88
      %s89 = sphi 0, %s86
      %s90 = sphi 0, %s89
      %s106 = sphi 0, %s90
      %s110 = sphi 0, %s110
      %s112 = sphi 0, %s110
      %s113 = sphi 0, %s112
      %s127 = sphi 0, %s113
      %s131 = sphi 0, %s131
      %s133 = sphi 0, %s131
      %s134 = sphi 0, %s133
      %s148 = sphi 0, %s134
      %s152 = sphi 0, %s152
      %s154 = sphi 0, %s152
      %s155 = sphi 0, %s154
      %s169 = sphi 0, %s155
      %s173 = sphi 0, %s173
      %s175 = sphi 0, %s173
      %s176 = sphi 0, %s175
      %s190 = sphi 0, %s176
      %s194 = sphi 0, %s194
      %s196 = sphi 0, %s194
      %s197 = sphi 0, %s196
      %s211 = sphi 0, %s197
      %s217 = sphi 0, %s219
      %s220 = sphi 0, %s217
      %s221 = sphi 0, %s220
      %s237 = sphi 0, %s221
    $region4: #{tpu_custom_call.1} parent=1 // loop_header_branch
      %27 = sbr.rel (%p25) target = $region8
    $region5: #{tpu_custom_call.1} parent=1 // loop_body
      %s29 = ssub.s32 %s24, 1
      %s30 = ssub.s32 %s24, 2
      %s31 = sadd.s32 %s24, 1
      %s32 = ssub.s32 %s24, %s31
      %p33 = scmp.eq.s32.totalorder %s32, 0
      %s35 = sadd.s32 %s34, 1
      %s36 = scalar_select %p33, %s34, %s35
      %p39 = pneg %p33
      %p40 = scmp.eq.s32.totalorder %s24, 1
      %p41 = por %p39, %p40
      %p42 = scmp.ne.s32.totalorder %s34, %s37
      %p43 = scmp.eq.s32.totalorder %s24, 0
      %p44 = por %p42, %p43
      %p45 = scmp.ne.s32.totalorder %s34, %s37
      %p46 = scmp.eq.s32.totalorder %s29, 1
      %p47 = por %p45, %p46
      %p48 = scmp.ne.s32.totalorder %s37, %s38
      %p49 = scmp.eq.s32.totalorder %s29, 0
      %p50 = por %p48, %p49
      %p51 = scmp.ne.s32.totalorder %s37, %s38
      %p52 = scmp.eq.s32.totalorder %s30, 1
      %p53 = por %p51, %p52
      %p55 = scmp.ne.s32.totalorder %s38, %s54
      %p56 = scmp.eq.s32.totalorder %s30, 0
      %p57 = por %p55, %p56
      %s58 = ssub.s32 %s24, %s31
      %p59 = scmp.eq.s32.totalorder %s58, 0
      %s61 = sadd.s32 %s60, 1
      %s62 = scalar_select %p59, %s60, %s61
      %p65 = pneg %p59
      %p66 = scmp.eq.s32.totalorder %s24, 1
      %p67 = por %p65, %p66
      %p68 = scmp.ne.s32.totalorder %s60, %s63
      %p69 = scmp.eq.s32.totalorder %s24, 0
      %p70 = por %p68, %p69
      %p71 = scmp.ne.s32.totalorder %s60, %s63
      %p72 = scmp.eq.s32.totalorder %s29, 1
      %p73 = por %p71, %p72
      %p74 = scmp.ne.s32.totalorder %s63, %s64
      %p75 = scmp.eq.s32.totalorder %s29, 0
      %p76 = por %p74, %p75
      %p77 = scmp.ne.s32.totalorder %s63, %s64
      %p78 = scmp.eq.s32.totalorder %s30, 1
      %p79 = por %p77, %p78
      %p81 = scmp.ne.s32.totalorder %s64, %s80
      %p82 = scmp.eq.s32.totalorder %s30, 0
      %p83 = por %p81, %p82
      %s84 = ssub.s32 %s24, %s31
      %p85 = scmp.eq.s32.totalorder %s84, 0
      %s87 = sadd.s32 %s86, 1
      %s88 = scalar_select %p85, %s86, %s87
      %p91 = pneg %p85
      %p92 = scmp.eq.s32.totalorder %s24, 1
      %p93 = por %p91, %p92
      %p94 = scmp.ne.s32.totalorder %s86, %s89
      %p95 = scmp.eq.s32.totalorder %s24, 0
      %p96 = por %p94, %p95
      %p97 = scmp.ne.s32.totalorder %s86, %s89
      %p98 = scmp.eq.s32.totalorder %s29, 1
      %p99 = por %p97, %p98
      %p100 = scmp.ne.s32.totalorder %s89, %s90
      %p101 = scmp.eq.s32.totalorder %s29, 0
      %p102 = por %p100, %p101
      %p103 = scmp.ne.s32.totalorder %s89, %s90
      %p104 = scmp.eq.s32.totalorder %s30, 1
      %p105 = por %p103, %p104
      %p107 = scmp.ne.s32.totalorder %s90, %s106
      %p108 = scmp.eq.s32.totalorder %s30, 0
      %p109 = por %p107, %p108
      %s111 = sadd.s32 %s110, 1
      %p114 = scmp.eq.s32.totalorder %s24, 1
      %p115 = scmp.ne.s32.totalorder %s110, %s112
      %p116 = scmp.eq.s32.totalorder %s24, 0
      %p117 = por %p115, %p116
      %p118 = scmp.ne.s32.totalorder %s110, %s112
      %p119 = scmp.eq.s32.totalorder %s29, 1
      %p120 = por %p118, %p119
      %p121 = scmp.ne.s32.totalorder %s112, %s113
      %p122 = scmp.eq.s32.totalorder %s29, 0
      %p123 = por %p121, %p122
      %p124 = scmp.ne.s32.totalorder %s112, %s113
      %p125 = scmp.eq.s32.totalorder %s30, 1
      %p126 = por %p124, %p125
      %p128 = scmp.ne.s32.totalorder %s113, %s127
      %p129 = scmp.eq.s32.totalorder %s30, 0
      %p130 = por %p128, %p129
      %s132 = sadd.s32 %s131, 1
      %p135 = scmp.eq.s32.totalorder %s24, 1
      %p136 = scmp.ne.s32.totalorder %s131, %s133
      %p137 = scmp.eq.s32.totalorder %s24, 0
      %p138 = por %p136, %p137
      %p139 = scmp.ne.s32.totalorder %s131, %s133
      %p140 = scmp.eq.s32.totalorder %s29, 1
      %p141 = por %p139, %p140
      %p142 = scmp.ne.s32.totalorder %s133, %s134
      %p143 = scmp.eq.s32.totalorder %s29, 0
      %p144 = por %p142, %p143
      %p145 = scmp.ne.s32.totalorder %s133, %s134
      %p146 = scmp.eq.s32.totalorder %s30, 1
      %p147 = por %p145, %p146
      %p149 = scmp.ne.s32.totalorder %s134, %s148
      %p150 = scmp.eq.s32.totalorder %s30, 0
      %p151 = por %p149, %p150
      %s153 = sadd.s32 %s152, 1
      %p156 = scmp.eq.s32.totalorder %s24, 1
      %p157 = scmp.ne.s32.totalorder %s152, %s154
      %p158 = scmp.eq.s32.totalorder %s24, 0
      %p159 = por %p157, %p158
      %p160 = scmp.ne.s32.totalorder %s152, %s154
      %p161 = scmp.eq.s32.totalorder %s29, 1
      %p162 = por %p160, %p161
      %p163 = scmp.ne.s32.totalorder %s154, %s155
      %p164 = scmp.eq.s32.totalorder %s29, 0
      %p165 = por %p163, %p164
      %p166 = scmp.ne.s32.totalorder %s154, %s155
      %p167 = scmp.eq.s32.totalorder %s30, 1
      %p168 = por %p166, %p167
      %p170 = scmp.ne.s32.totalorder %s155, %s169
      %p171 = scmp.eq.s32.totalorder %s30, 0
      %p172 = por %p170, %p171
      %s174 = sadd.s32 %s173, 1
      %p177 = scmp.eq.s32.totalorder %s24, 1
      %p178 = scmp.ne.s32.totalorder %s173, %s175
      %p179 = scmp.eq.s32.totalorder %s24, 0
      %p180 = por %p178, %p179
      %p181 = scmp.ne.s32.totalorder %s173, %s175
      %p182 = scmp.eq.s32.totalorder %s29, 1
      %p183 = por %p181, %p182
      %p184 = scmp.ne.s32.totalorder %s175, %s176
      %p185 = scmp.eq.s32.totalorder %s29, 0
      %p186 = por %p184, %p185
      %p187 = scmp.ne.s32.totalorder %s175, %s176
      %p188 = scmp.eq.s32.totalorder %s30, 1
      %p189 = por %p187, %p188
      %p191 = scmp.ne.s32.totalorder %s176, %s190
      %p192 = scmp.eq.s32.totalorder %s30, 0
      %p193 = por %p191, %p192
      %s195 = sadd.s32 %s194, 1
      %p198 = scmp.eq.s32.totalorder %s24, 1
      %p199 = scmp.ne.s32.totalorder %s194, %s196
      %p200 = scmp.eq.s32.totalorder %s24, 0
      %p201 = por %p199, %p200
      %p202 = scmp.ne.s32.totalorder %s194, %s196
      %p203 = scmp.eq.s32.totalorder %s29, 1
      %p204 = por %p202, %p203
      %p205 = scmp.ne.s32.totalorder %s196, %s197
      %p206 = scmp.eq.s32.totalorder %s29, 0
      %p207 = por %p205, %p206
      %p208 = scmp.ne.s32.totalorder %s196, %s197
      %p209 = scmp.eq.s32.totalorder %s30, 1
      %p210 = por %p208, %p209
      %p212 = scmp.ne.s32.totalorder %s197, %s211
      %p213 = scmp.eq.s32.totalorder %s30, 0
      %p214 = por %p212, %p213
      %s215 = ssub.s32 %s24, %s31
      %p216 = scmp.eq.s32.totalorder %s215, 0
      %s218 = sadd.s32 %s217, 1
      %s219 = scalar_select %p216, %s217, %s218
      %p222 = pneg %p216
      %p223 = scmp.eq.s32.totalorder %s24, 1
      %p224 = por %p222, %p223
      %p225 = scmp.ne.s32.totalorder %s217, %s220
      %p226 = scmp.eq.s32.totalorder %s24, 0
      %p227 = por %p225, %p226
      %p228 = scmp.ne.s32.totalorder %s217, %s220
      %p229 = scmp.eq.s32.totalorder %s29, 1
      %p230 = por %p228, %p229
      %p231 = scmp.ne.s32.totalorder %s220, %s221
      %p232 = scmp.eq.s32.totalorder %s29, 0
      %p233 = por %p231, %p232
      %p234 = scmp.ne.s32.totalorder %s220, %s221
      %p235 = scmp.eq.s32.totalorder %s30, 1
      %p236 = por %p234, %p235
      %p238 = scmp.ne.s32.totalorder %s221, %s237
      %p239 = scmp.eq.s32.totalorder %s30, 0
      %p240 = por %p238, %p239
      %p241 = scmp.le.s32.totalorder 1, %s24
      %p242 = scmp.lt.s32.totalorder %s24, 3
      %p243 = pnand %p241, %p242
      %p244 = pneg %p243
      // Predicated region
      $region9: #{tpu_custom_call.1} parent=5 // pred_check
        _
      $region10: #{tpu_custom_call.1} parent=5 // pred_check_branch
        %246 = sbr.rel (%p243) target = $region12
      $region11: #{tpu_custom_call.1} parent=5 // pred_region
        %s247 = ssub.s32 %s24, 1
        // Predicated region
        $region13: #{tpu_custom_call.1} parent=11 // pred_check
          %p248 = pneg %p123
        $region14: #{tpu_custom_call.1} parent=11 // pred_check_branch
          %250 = sbr.rel (%p248) target = $region16
        $region15: #{tpu_custom_call.1} parent=11 // pred_region
          %s252 = ssub.s32 512, 512
          %253 = vsyncadd [#allocation6], %s252
          %s254 = sshll.u32 [#allocation7], 4
          %s255 = int_to_ptr.vmem [resolvable:$true] %s254
          %260 = dma.hbm_to_vmem [thread:$0]  %s3, 512, %s255, [#allocation6], 128, 128, 8
        $region16: #{tpu_custom_call.1} parent=11 // pred_fallthru
          _
        // Predicated region
        $region17: #{tpu_custom_call.1} parent=11 // pred_check
          %p261 = pneg %p144
        $region18: #{tpu_custom_call.1} parent=11 // pred_check_branch
          %263 = sbr.rel (%p261) target = $region20
        $region19: #{tpu_custom_call.1} parent=11 // pred_region
          _
        $region20: #{tpu_custom_call.1} parent=11 // pred_fallthru
          _
        // Predicated region
        $region21: #{tpu_custom_call.1} parent=11 // pred_check
          %p264 = pneg %p165
        $region22: #{tpu_custom_call.1} parent=11 // pred_check_branch
          %266 = sbr.rel (%p264) target = $region24
        $region23: #{tpu_custom_call.1} parent=11 // pred_region
          _
        $region24: #{tpu_custom_call.1} parent=11 // pred_fallthru
          _
        // Predicated region
        $region25: #{tpu_custom_call.1} parent=11 // pred_check
          %p267 = pneg %p186
        $region26: #{tpu_custom_call.1} parent=11 // pred_check_branch
          %269 = sbr.rel (%p267) target = $region28
        $region27: #{tpu_custom_call.1} parent=11 // pred_region
          %s271 = ssub.s32 512, 512
          %272 = vsyncadd [#allocation9], %s271
          %s273 = sshll.u32 [#allocation8], 4
          %s274 = int_to_ptr.vmem [resolvable:$true] %s273
          %279 = dma.hbm_to_vmem [thread:$0]  %s6, 512, %s274, [#allocation9], 128, 128, 8
        $region28: #{tpu_custom_call.1} parent=11 // pred_fallthru
          _
        // Predicated region
        $region29: #{tpu_custom_call.1} parent=11 // pred_check
          %p280 = pneg %p207
        $region30: #{tpu_custom_call.1} parent=11 // pred_check_branch
          %282 = sbr.rel (%p280) target = $region32
        $region31: #{tpu_custom_call.1} parent=11 // pred_region
          _
        $region32: #{tpu_custom_call.1} parent=11 // pred_fallthru
          _
      $region12: #{tpu_custom_call.1} parent=5 // pred_fallthru
        _
      %p283 = scmp.lt.s32.totalorder %s24, 2
      // Predicated region
      $region33: #{tpu_custom_call.1} parent=5 // pred_check
        %p284 = pneg %p283
      $region34: #{tpu_custom_call.1} parent=5 // pred_check_branch
        %286 = sbr.rel (%p284) target = $region36
      $region35: #{tpu_custom_call.1} parent=5 // pred_region
        // Predicated region
        $region37: #{tpu_custom_call.1} parent=35 // pred_check
          %p287 = pneg %p44
        $region38: #{tpu_custom_call.1} parent=35 // pred_check_branch
          %289 = sbr.rel (%p287) target = $region40
        $region39: #{tpu_custom_call.1} parent=35 // pred_region
          %s290 = sand.u32 %s34, 1
          %s291 = scalar_lea.sflag [#allocation3], %s290
          %s292 = sand.u32 %s34, 1
          %s293 = smul.addr %s292, 8
          %s294 = scalar_lea.vmem [#allocation2], %s293
          %s296 = ssub.s32 128, 128
          %297 = vsyncadd %s291, %s296
          %s298 = smul.addr %s24, 128
          %s299 = scalar_lea.hbm %s0, %s298
          %s301 = sshll.u32 %s294, 4
          %s302 = int_to_ptr.vmem [resolvable:$true] %s301
          %304 = dma.hbm_to_vmem [thread:$0]  %s299, 128, %s302, %s291
        $region40: #{tpu_custom_call.1} parent=35 // pred_fallthru
          _
        // Predicated region
        $region41: #{tpu_custom_call.1} parent=35 // pred_check
          %p305 = pneg %p70
        $region42: #{tpu_custom_call.1} parent=35 // pred_check_branch
          %307 = sbr.rel (%p305) target = $region44
        $region43: #{tpu_custom_call.1} parent=35 // pred_region
          %s308 = sand.u32 %s24, 1
          %s309 = scalar_lea.sflag [#allocation6], %s308
          %s310 = sand.u32 %s60, 1
          %s311 = smul.addr %s310, 8
          %s312 = scalar_lea.vmem [#allocation5], %s311
          %s314 = ssub.s32 128, 128
          %315 = vsyncadd %s309, %s314
          %s316 = smul.addr %s24, 128
          %s317 = scalar_lea.hbm %s1, %s316
          %s319 = sshll.u32 %s312, 4
          %s320 = int_to_ptr.vmem [resolvable:$true] %s319
          %322 = dma.hbm_to_vmem [thread:$0]  %s317, 128, %s320, %s309
        $region44: #{tpu_custom_call.1} parent=35 // pred_fallthru
          _
        // Predicated region
        $region45: #{tpu_custom_call.1} parent=35 // pred_check
          %p323 = pneg %p96
        $region46: #{tpu_custom_call.1} parent=35 // pred_check_branch
          %325 = sbr.rel (%p323) target = $region48
        $region47: #{tpu_custom_call.1} parent=35 // pred_region
          %p326 = scmp.lt.s32.totalorder %s24, 1
          %s327 = scalar_select %p326, %s24, 1
          %s328 = smul.addr %s327, 8
          %s329 = scalar_lea.vmem %s2, %s328
        $region48: #{tpu_custom_call.1} parent=35 // pred_fallthru
          _
      $region36: #{tpu_custom_call.1} parent=5 // pred_fallthru
        _
      %p330 = scmp.le.s32.totalorder 1, %s24
      %p331 = scmp.lt.s32.totalorder %s24, 3
      %p332 = pnand %p330, %p331
      %p333 = pneg %p332
      // Predicated region
      $region49: #{tpu_custom_call.1} parent=5 // pred_check
        _
      $region50: #{tpu_custom_call.1} parent=5 // pred_check_branch
        %335 = sbr.rel (%p332) target = $region52
      $region51: #{tpu_custom_call.1} parent=5 // pred_region
        %s336 = ssub.s32 %s24, 1
        %s337 = sand.u32 %s37, 1
        %s338 = scalar_lea.sflag [#allocation3], %s337
        %s339 = sand.u32 %s37, 1
        %s340 = smul.addr %s339, 8
        %s341 = scalar_lea.vmem [#allocation2], %s340
        // Predicated region
        $region53: #{tpu_custom_call.1} parent=51 // pred_check
          %p342 = pneg %p50
        $region54: #{tpu_custom_call.1} parent=51 // pred_check_branch
          %344 = sbr.rel (%p342) target = $region56
        $region55: #{tpu_custom_call.1} parent=51 // pred_region
          %345 = dma.done %s338, 128
        $region56: #{tpu_custom_call.1} parent=51 // pred_fallthru
          _
        %s346 = sand.u32 %s29, 1
        %s347 = scalar_lea.sflag [#allocation6], %s346
        %s348 = sand.u32 %s63, 1
        %s349 = smul.addr %s348, 8
        %s350 = scalar_lea.vmem [#allocation5], %s349
        // Predicated region
        $region57: #{tpu_custom_call.1} parent=51 // pred_check
          %p351 = pneg %p76
        $region58: #{tpu_custom_call.1} parent=51 // pred_check_branch
          %353 = sbr.rel (%p351) target = $region60
        $region59: #{tpu_custom_call.1} parent=51 // pred_region
          %354 = dma.done %s347, 128
        $region60: #{tpu_custom_call.1} parent=51 // pred_fallthru
          _
        // Predicated region
        $region61: #{tpu_custom_call.1} parent=51 // pred_check
          %p355 = pneg %p123
        $region62: #{tpu_custom_call.1} parent=51 // pred_check_branch
          %357 = sbr.rel (%p355) target = $region64
        $region63: #{tpu_custom_call.1} parent=51 // pred_region
          %358 = dma.done [#allocation6], 512
        $region64: #{tpu_custom_call.1} parent=51 // pred_fallthru
          _
        // Predicated region
        $region65: #{tpu_custom_call.1} parent=51 // pred_check
          %p359 = pneg %p186
        $region66: #{tpu_custom_call.1} parent=51 // pred_check_branch
          %361 = sbr.rel (%p359) target = $region68
        $region67: #{tpu_custom_call.1} parent=51 // pred_region
          %362 = dma.done [#allocation9], 512
        $region68: #{tpu_custom_call.1} parent=51 // pred_fallthru
          _
        %s363 = sand.u32 %s37, 1
        %s364 = scalar_lea.sflag [#allocation3], %s363
        %s365 = sand.u32 %s37, 1
        %s366 = smul.addr %s365, 8
        %s367 = scalar_lea.vmem [#allocation2], %s366
        %p368 = pneg %p50
        %p369 = pneg %p47
        %s370 = sand.u32 %s29, 1
        %s371 = scalar_lea.sflag [#allocation6], %s370
        %s372 = sand.u32 %s63, 1
        %s373 = smul.addr %s372, 8
        %s374 = scalar_lea.vmem [#allocation5], %s373
        %p375 = pneg %p76
        %p376 = pneg %p73
        %p377 = scmp.lt.s32.totalorder %s29, 1
        %s378 = scalar_select %p377, %s29, 1
        %s379 = smul.addr %s378, 8
        %s380 = scalar_lea.vmem %s2, %s379
        %p381 = pneg %p102
        %p382 = pneg %p99
        %p383 = pneg %p123
        %p384 = pneg %p120
        %p385 = pneg %p144
        %p386 = pneg %p141
        %p387 = pneg %p165
        %p388 = pneg %p162
        %p389 = pneg %p186
        %p390 = pneg %p183
        %p391 = pneg %p207
        %p392 = pneg %p204
        %p393 = pneg %p233
        %p394 = pneg %p230
        %s395 = sand.u32 %s220, 1
        %s396 = scalar_lea.sflag [#allocation4], %s395
        %s397 = sand.u32 %s220, 1
        %s398 = smul.addr %s397, 8
        %s399 = scalar_lea.vmem [#allocation10], %s398
        %p400 = scmp.lt.s32.totalorder %s29, 1
        %s401 = scalar_select %p400, %s29, 1
        %s402 = smul.addr %s401, 8
        %s403 = scalar_lea.vmem %s2, %s402
        %v404 = vld [vmem:[%s341] sm:$0xff]
        %v405 = vld [vmem:[%s350] sm:$0xff]
        %v406 = vld [vmem:[#allocation7] sm:$0xff]
        %v407 = vld [vmem:[#allocation7 + $0x8] sm:$0xff]
        %v408 = vld [vmem:[#allocation7 + $0x10] sm:$0xff]
        %v409 = vld [vmem:[#allocation7 + $0x18] sm:$0xff]
        %v410 = vld [vmem:[%s4] sm:$0xff]
        %v411 = vld [vmem:[%s4 + $0x8] sm:$0xff]
        %v412 = vld [vmem:[%s4 + $0x10] sm:$0xff]
        %v413 = vld [vmem:[%s4 + $0x18] sm:$0xff]
        %vm414 = vcmask 261120
        %v416 = vsel %vm414, %v405, 0
        %418 = vmatprep.subr.mxu0 0.0
        %419 = vmatpush1.msra.mxu0 %v410
        %420 = vmatprep.subr.mxu0 0.0
        %421 = vmatpush1.msra.mxu0 %v411
        %422 = vmatprep.subr.mxu0 0.0
        %423 = vmatpush1.msra.mxu0 %v412
        %424 = vmatprep.subr.mxu0 0.0
        %425 = vmatpush1.msra.mxu0 %v413
        %426 = vmatprep.subr.mxu0 0.0
        %427 = vmatpush1.msra.mxu0 0.0
        %428 = vmatprep.subr.mxu0 0.0
        %429 = vmatpush1.msra.mxu0 0.0
        %430 = vmatprep.subr.mxu0 0.0
        %431 = vmatpush1.msra.mxu0 0.0
        %432 = vmatprep.subr.mxu0 0.0
        %433 = vmatpush1.msra.mxu0 0.0
        %434 = vmatprep.subr.mxu0 0.0
        %435 = vmatpush1.msra.mxu0 0.0
        %436 = vmatprep.subr.mxu0 0.0
        %437 = vmatpush1.msra.mxu0 0.0
        %438 = vmatprep.subr.mxu0 0.0
        %439 = vmatpush1.msra.mxu0 0.0
        %440 = vmatprep.subr.mxu0 0.0
        %441 = vmatpush1.msra.mxu0 0.0
        %442 = vmatprep.subr.mxu0 0.0
        %443 = vmatpush1.msra.mxu0 0.0
        %444 = vmatprep.subr.mxu0 0.0
        %445 = vmatpush1.msra.mxu0 0.0
        %446 = vmatprep.subr.mxu0 0.0
        %447 = vmatpush1.msra.mxu0 0.0
        %448 = vmatprep.subr.mxu0 0.0
        %449 = vmatpush1.msra.mxu0 0.0
        %450 = vmatprep.subr.mxu0 0.0
        %451 = vmatpush1.msra.mxu0 0.0
        %452 = vmatprep.subr.mxu0 0.0
        %453 = vmatpush1.msra.mxu0 0.0
        %454 = vmatprep.subr.mxu0 0.0
        %455 = vmatpush1.msra.mxu0 0.0
        %456 = vmatprep.subr.mxu0 0.0
        %457 = vmatpush1.msra.mxu0 0.0
        %458 = vmatprep.subr.mxu0 0.0
        %459 = vmatpush1.msra.mxu0 0.0
        %460 = vmatprep.subr.mxu0 0.0
        %461 = vmatpush1.msra.mxu0 0.0
        %462 = vmatprep.subr.mxu0 0.0
        %463 = vmatpush1.msra.mxu0 0.0
        %464 = vmatprep.subr.mxu0 0.0
        %465 = vmatpush1.msra.mxu0 0.0
        %466 = vmatprep.subr.mxu0 0.0
        %467 = vmatpush1.msra.mxu0 0.0
        %468 = vmatprep.subr.mxu0 0.0
        %469 = vmatpush1.msra.mxu0 0.0
        %470 = vmatprep.subr.mxu0 0.0
        %471 = vmatpush1.msra.mxu0 0.0
        %472 = vmatprep.subr.mxu0 0.0
        %473 = vmatpush1.msra.mxu0 0.0
        %474 = vmatprep.subr.mxu0 0.0
        %475 = vmatpush1.msra.mxu0 0.0
        %476 = vmatprep.subr.mxu0 0.0
        %477 = vmatpush1.msra.mxu0 0.0
        %478 = vmatprep.subr.mxu0 0.0
        %479 = vmatpush1.msra.mxu0 0.0
        %480 = vmatprep.subr.mxu0 0.0
        %481 = vmatpush1.msra.mxu0 0.0
        %482 = vmatprep.mubr.f32.mxu0 0.0
        %483 = vmatmul.mubr.f32.gmra.mrb[0].mxu0 %v416
        %v484 = vpop.f32.mrb[0].mxu0
        %v485 = vadd.f32 0.0, %v484
        %v486 = vpop.f32.mrb[0].mxu0
        %487 = vdwg.mxu0
        %v489 = vsel %vm414, %v404, 0
        %491 = vmatprep.subr.mxu0 0.0
        %492 = vmatpush1.msra.mxu0 %v406
        %493 = vmatprep.subr.mxu0 0.0
        %494 = vmatpush1.msra.mxu0 %v407
        %495 = vmatprep.subr.mxu0 0.0
        %496 = vmatpush1.msra.mxu0 %v408
        %497 = vmatprep.subr.mxu0 0.0
        %498 = vmatpush1.msra.mxu0 %v409
        %499 = vmatprep.subr.mxu0 0.0
        %500 = vmatpush1.msra.mxu0 0.0
        %501 = vmatprep.subr.mxu0 0.0
        %502 = vmatpush1.msra.mxu0 0.0
        %503 = vmatprep.subr.mxu0 0.0
        %504 = vmatpush1.msra.mxu0 0.0
        %505 = vmatprep.subr.mxu0 0.0
        %506 = vmatpush1.msra.mxu0 0.0
        %507 = vmatprep.subr.mxu0 0.0
        %508 = vmatpush1.msra.mxu0 0.0
        %509 = vmatprep.subr.mxu0 0.0
        %510 = vmatpush1.msra.mxu0 0.0
        %511 = vmatprep.subr.mxu0 0.0
        %512 = vmatpush1.msra.mxu0 0.0
        %513 = vmatprep.subr.mxu0 0.0
        %514 = vmatpush1.msra.mxu0 0.0
        %515 = vmatprep.subr.mxu0 0.0
        %516 = vmatpush1.msra.mxu0 0.0
        %517 = vmatprep.subr.mxu0 0.0
        %518 = vmatpush1.msra.mxu0 0.0
        %519 = vmatprep.subr.mxu0 0.0
        %520 = vmatpush1.msra.mxu0 0.0
        %521 = vmatprep.subr.mxu0 0.0
        %522 = vmatpush1.msra.mxu0 0.0
        %523 = vmatprep.subr.mxu0 0.0
        %524 = vmatpush1.msra.mxu0 0.0
        %525 = vmatprep.subr.mxu0 0.0
        %526 = vmatpush1.msra.mxu0 0.0
        %527 = vmatprep.subr.mxu0 0.0
        %528 = vmatpush1.msra.mxu0 0.0
        %529 = vmatprep.subr.mxu0 0.0
        %530 = vmatpush1.msra.mxu0 0.0
        %531 = vmatprep.subr.mxu0 0.0
        %532 = vmatpush1.msra.mxu0 0.0
        %533 = vmatprep.subr.mxu0 0.0
        %534 = vmatpush1.msra.mxu0 0.0
        %535 = vmatprep.subr.mxu0 0.0
        %536 = vmatpush1.msra.mxu0 0.0
        %537 = vmatprep.subr.mxu0 0.0
        %538 = vmatpush1.msra.mxu0 0.0
        %539 = vmatprep.subr.mxu0 0.0
        %540 = vmatpush1.msra.mxu0 0.0
        %541 = vmatprep.subr.mxu0 0.0
        %542 = vmatpush1.msra.mxu0 0.0
        %543 = vmatprep.subr.mxu0 0.0
        %544 = vmatpush1.msra.mxu0 0.0
        %545 = vmatprep.subr.mxu0 0.0
        %546 = vmatpush1.msra.mxu0 0.0
        %547 = vmatprep.subr.mxu0 0.0
        %548 = vmatpush1.msra.mxu0 0.0
        %549 = vmatprep.subr.mxu0 0.0
        %550 = vmatpush1.msra.mxu0 0.0
        %551 = vmatprep.subr.mxu0 0.0
        %552 = vmatpush1.msra.mxu0 0.0
        %553 = vmatprep.subr.mxu0 0.0
        %554 = vmatpush1.msra.mxu0 0.0
        %555 = vmatprep.mubr.f32.mxu0 0.0
        %556 = vmatmul.mubr.f32.gmra.mrb[0].mxu0 %v489
        %v557 = vpop.f32.mrb[0].mxu0
        %v558 = vadd.f32 %v485, %v557
        %v559 = vpop.f32.mrb[0].mxu0
        %560 = vdwg.mxu0
        %v561 = vld [vmem:[%s5] sm:$0x1]
        %v563 = vlaneseq
        %v564 = vshrl.u32 %v563, 7
        %v565 = vsub.s32 0, %v564
        %v566 = vrot.slane %v561, %v565
        %v568 = vadd.f32 %v558, %v566
        %v569 = vtanh.pop %v568
        %v570 = vld [vmem:[#allocation8] sm:$0xff]
        %v571 = vld [vmem:[#allocation8 + $0x8] sm:$0xff]
        %v572 = vld [vmem:[#allocation8 + $0x10] sm:$0xff]
        %v573 = vld [vmem:[#allocation8 + $0x18] sm:$0xff]
        %v574 = vld [vmem:[%s7] sm:$0x1]
        %v576 = vlaneseq
        %v577 = vshrl.u32 %v576, 7
        %v578 = vsub.s32 0, %v577
        %v579 = vrot.slane %v574, %v578
        %v582 = vsel %vm414, %v569, 0
        %584 = vmatprep.subr.mxu0 0.0
        %585 = vmatpush1.msra.mxu0 %v570
        %586 = vmatprep.subr.mxu0 0.0
        %587 = vmatpush1.msra.mxu0 %v571
        %588 = vmatprep.subr.mxu0 0.0
        %589 = vmatpush1.msra.mxu0 %v572
        %590 = vmatprep.subr.mxu0 0.0
        %591 = vmatpush1.msra.mxu0 %v573
        %592 = vmatprep.subr.mxu0 0.0
        %593 = vmatpush1.msra.mxu0 0.0
        %594 = vmatprep.subr.mxu0 0.0
        %595 = vmatpush1.msra.mxu0 0.0
        %596 = vmatprep.subr.mxu0 0.0
        %597 = vmatpush1.msra.mxu0 0.0
        %598 = vmatprep.subr.mxu0 0.0
        %599 = vmatpush1.msra.mxu0 0.0
        %600 = vmatprep.subr.mxu0 0.0
        %601 = vmatpush1.msra.mxu0 0.0
        %602 = vmatprep.subr.mxu0 0.0
        %603 = vmatpush1.msra.mxu0 0.0
        %604 = vmatprep.subr.mxu0 0.0
        %605 = vmatpush1.msra.mxu0 0.0
        %606 = vmatprep.subr.mxu0 0.0
        %607 = vmatpush1.msra.mxu0 0.0
        %608 = vmatprep.subr.mxu0 0.0
        %609 = vmatpush1.msra.mxu0 0.0
        %610 = vmatprep.subr.mxu0 0.0
        %611 = vmatpush1.msra.mxu0 0.0
        %612 = vmatprep.subr.mxu0 0.0
        %613 = vmatpush1.msra.mxu0 0.0
        %614 = vmatprep.subr.mxu0 0.0
        %615 = vmatpush1.msra.mxu0 0.0
        %616 = vmatprep.subr.mxu0 0.0
        %617 = vmatpush1.msra.mxu0 0.0
        %618 = vmatprep.subr.mxu0 0.0
        %619 = vmatpush1.msra.mxu0 0.0
        %620 = vmatprep.subr.mxu0 0.0
        %621 = vmatpush1.msra.mxu0 0.0
        %622 = vmatprep.subr.mxu0 0.0
        %623 = vmatpush1.msra.mxu0 0.0
        %624 = vmatprep.subr.mxu0 0.0
        %625 = vmatpush1.msra.mxu0 0.0
        %626 = vmatprep.subr.mxu0 0.0
        %627 = vmatpush1.msra.mxu0 0.0
        %628 = vmatprep.subr.mxu0 0.0
        %629 = vmatpush1.msra.mxu0 0.0
        %630 = vmatprep.subr.mxu0 0.0
        %631 = vmatpush1.msra.mxu0 0.0
        %632 = vmatprep.subr.mxu0 0.0
        %633 = vmatpush1.msra.mxu0 0.0
        %634 = vmatprep.subr.mxu0 0.0
        %635 = vmatpush1.msra.mxu0 0.0
        %636 = vmatprep.subr.mxu0 0.0
        %637 = vmatpush1.msra.mxu0 0.0
        %638 = vmatprep.subr.mxu0 0.0
        %639 = vmatpush1.msra.mxu0 0.0
        %640 = vmatprep.subr.mxu0 0.0
        %641 = vmatpush1.msra.mxu0 0.0
        %642 = vmatprep.subr.mxu0 0.0
        %643 = vmatpush1.msra.mxu0 0.0
        %644 = vmatprep.subr.mxu0 0.0
        %645 = vmatpush1.msra.mxu0 0.0
        %646 = vmatprep.subr.mxu0 0.0
        %647 = vmatpush1.msra.mxu0 0.0
        %648 = vmatprep.mubr.f32.mxu0 0.0
        %649 = vmatmul.mubr.f32.gmra.mrb[0].mxu0 %v582
        %v650 = vpop.f32.mrb[0].mxu0
        %v651 = vadd.f32 %v579, %v650
        %v652 = vpop.f32.mrb[0].mxu0
        %653 = vdwg.mxu0
        %v654 = vxor.u32 %v651, 2147483648
        %v655 = vmul.f32 %v654, 1.442695
        %v656 = vpow.pop %v655
        %v657 = vadd.f32 %v656, 1.0
        %v658 = vrcp.pop %v657
        %v659 = vmul.f32 1.0, %v658
        %v660 = vld [vmem:[%s403] sm:$0xff]
        %662 = vset.pattern.permute.xlu0 0
        %663 = vperm.xlu0 %662, %v660
        %v664 = vpop.permute.xlu0 %663
        %vm666 = vcmp.gt.f32.partialorder %v659, %v664
        %v667 = vsel %vm666, %v659, 1.0
        %v668 = vmul.f32 %v405, %v667
        %669 = vst.msk [vmem:[%s399] sm:$0xff] %vm414, %v668
        %s670 = sand.u32 %s220, 1
        %s671 = scalar_lea.sflag [#allocation4], %s670
        %s672 = sand.u32 %s220, 1
        %s673 = smul.addr %s672, 8
        %s674 = scalar_lea.vmem [#allocation10], %s673
        // Predicated region
        $region69: #{tpu_custom_call.1} parent=51 // pred_check
          %p675 = pneg %p230
        $region70: #{tpu_custom_call.1} parent=51 // pred_check_branch
          %677 = sbr.rel (%p675) target = $region72
        $region71: #{tpu_custom_call.1} parent=51 // pred_region
          %s679 = ssub.s32 128, 128
          %680 = vsyncadd %s671, %s679
          %s681 = smul.addr %s29, 128
          %s682 = scalar_lea.hbm %s8, %s681
          %s684 = sshll.u32 %s674, 4
          %s685 = int_to_ptr.vmem [resolvable:$true] %s684
          %687 = dma.vmem_to_hbm [thread:$0]  %s685, 128, %s682, %s671
        $region72: #{tpu_custom_call.1} parent=51 // pred_fallthru
          _
      $region52: #{tpu_custom_call.1} parent=5 // pred_fallthru
        _
      %p688 = scmp.le.s32.totalorder 2, %s24
      // Predicated region
      $region73: #{tpu_custom_call.1} parent=5 // pred_check
        %p689 = pneg %p688
      $region74: #{tpu_custom_call.1} parent=5 // pred_check_branch
        %691 = sbr.rel (%p689) target = $region76
      $region75: #{tpu_custom_call.1} parent=5 // pred_region
        %s692 = ssub.s32 %s24, 2
        // Predicated region
        $region77: #{tpu_custom_call.1} parent=75 // pred_check
          %p693 = pneg %p236
        $region78: #{tpu_custom_call.1} parent=75 // pred_check_branch
          %695 = sbr.rel (%p693) target = $region80
        $region79: #{tpu_custom_call.1} parent=75 // pred_region
          %s696 = sand.u32 %s221, 1
          %s697 = scalar_lea.sflag [#allocation4], %s696
          %s698 = sand.u32 %s221, 1
          %s699 = smul.addr %s698, 8
          %s700 = scalar_lea.vmem [#allocation10], %s699
          %701 = dma.done %s697, 128
        $region80: #{tpu_custom_call.1} parent=75 // pred_fallthru
          _
      $region76: #{tpu_custom_call.1} parent=5 // pred_fallthru
        _
    $region6: #{tpu_custom_call.1} parent=1 // loop_footer
      %s28 = sadd.s32 1, %s24
    $region7: #{tpu_custom_call.1} parent=1 // loop_footer_branch
      %23 = sbr.rel target = $region3
    $region8: #{tpu_custom_call.1} parent=1 // loop_exit
      _
    %702 = vsyncpa [#allocation3], 1
    %s703 = scalar_lea.sflag [#allocation3], 1
    %704 = vsyncpa %s703, 1
    %705 = vsyncpa [#allocation6], 1
    %s706 = scalar_lea.sflag [#allocation6], 1
    %707 = vsyncpa %s706, 1
    %708 = vsyncpa [#allocation9], 1
    %709 = vsyncpa [#allocation4], 1
    %s710 = scalar_lea.sflag [#allocation4], 1
    %711 = vsyncpa %s710, 1

</llo_original>
